<compile_context>
chip_gen: v5e
topology: v5e:2x2
jax: 0.10.0
libtpu: 0.0.40
codegen_flags: <defaults>
</compile_context>

<pallas_src>
import functools

import numpy as np
import jax
import jax.numpy as jnp
from jax.experimental import pallas as pl
from jax.experimental.pallas import tpu as pltpu


# ----------------------------------------------------------------------------
# Helpers matching the PyTorch module (numpy, parameter setup only)
# ----------------------------------------------------------------------------
def round_up_to_multiple(value, factor):
    return (value + factor - 1) // factor


def compute_group_width(dim, grp_size=128, pack_factor=8):
    return round_up_to_multiple(dim // grp_size, pack_factor)


def quantize_and_pack_weights(raw_weights, row_block, col_block):
    """Numpy translation of the module's AWQ packing (produces the int16 buffer)."""
    M, N = raw_weights.shape
    kd = np.asarray(raw_weights).reshape(M, N // 32, 32)
    kd = kd.reshape(M, N // 32, 4, 4, 2).transpose(0, 1, 3, 2, 4)
    kd = kd.reshape(M, N // 32, 32)
    kd = kd.reshape(M, N // 32, 4, 8)
    kd = kd.reshape(M, N // 32, 4, 4, 2).transpose(0, 1, 2, 4, 3)
    kd = kd.reshape(M, N)
    kd = kd.reshape(M // row_block, row_block, N // col_block, col_block)
    kd = kd.transpose(0, 2, 1, 3)
    kd = kd.reshape(M // row_block, N // col_block, col_block, row_block)
    kd = kd[..., 0] | (kd[..., 1] << 4) | (kd[..., 2] << 8) | (kd[..., 3] << 12)
    kd = kd.reshape(M // row_block, N)
    return kd.astype(np.uint16).view(np.int16)


def awq_unpack(packed_int16, out_dim, in_dim, row_block=4, col_block=64):
    """Exact inverse of quantize_and_pack_weights -> q of shape (out_dim, in_dim)."""
    M, N = out_dim, in_dim
    p = np.asarray(packed_int16).astype(np.int64) & 0xFFFF          # (M//4, N)
    p = p.reshape(M // row_block, N // col_block, col_block)
    kd = np.stack([(p >> (4 * j)) & 0xF for j in range(row_block)], axis=-1)
    kd = kd.reshape(M // row_block, N // col_block, row_block, col_block)
    kd = kd.transpose(0, 2, 1, 3)                                    # (M//4, 4, N//64, 64)
    kd = kd.reshape(M, N)
    kd = kd.reshape(M, N // 32, 4, 2, 4).transpose(0, 1, 2, 4, 3)    # undo inner-8 swap
    kd = kd.reshape(M, N // 32, 32)
    kd = kd.reshape(M, N // 32, 4, 4, 2).transpose(0, 1, 3, 2, 4)    # undo inner-32 swap
    return kd.reshape(M, N).astype(np.int32)


def repack_nibbles_for_tpu(q):
    """TPU layout: int32 (K//8, N). Nibble j of element [p, n] holds q[n, 8*p + j],
    so the kernel unpacks with shift/mask + a layout-aligned (K/8, 8, tn)->(K, tn)
    reshape (no sublane concatenation)."""
    N_out, K = q.shape
    qT = np.ascontiguousarray(q.T).astype(np.uint32).reshape(K // 8, 8, N_out)
    packed = np.zeros((K // 8, N_out), dtype=np.uint32)
    for j in range(8):
        packed |= (qT[:, j, :] & np.uint32(0xF)) << np.uint32(4 * j)
    return jnp.asarray(packed.view(np.int32))


# ----------------------------------------------------------------------------
# Pallas kernel: on-the-fly 4-bit unpack + bf16 MXU matmul, scale/zero epilogue
# ----------------------------------------------------------------------------
def awq_gemm_kernel(x_ref, wp_ref, s_ref, z_ref, b_ref, o_ref, acc_ref, *,
                    grp_sz, gps):
    # grid = (m, n, k); k is the reduction axis over blocks of `gps` quant groups
    k = pl.program_id(2)

    @pl.when(k == 0)
    def _():
        acc_ref[...] = jnp.zeros_like(acc_ref)

    spg = grp_sz // 8                     # packed int32 rows per quant group
    tn = wp_ref.shape[-1]
    # per-nibble shift amounts (0,4,...,28) along the middle axis
    shifts = jax.lax.broadcasted_iota(jnp.int32, (1, 8, tn), 1) * 4

    acc = acc_ref[...]
    for g in range(gps):                  # static unroll; gps is small
        # --- unpack this group's 4-bit weights -> (grp_sz, tn) bf16 in [0, 16) ---
        packed = wp_ref[g * spg:(g + 1) * spg, :]            # (spg, tn) int32
        nib = (packed[:, None, :] >> shifts) & 0xF           # (spg, 8, tn)
        qg = nib.reshape(grp_sz, tn).astype(jnp.bfloat16)

        # --- this group's activations (x resident in VMEM; slab select) ---------
        xg = x_ref[k * gps + g]                              # (tm, grp_sz) bf16

        # --- s * (x @ q) + rowsum(x) * z  (scale/zero applied per output) -------
        partial = jnp.dot(xg, qg, preferred_element_type=jnp.float32)     # MXU
        xg_sum = jnp.sum(xg.astype(jnp.float32), axis=1, keepdims=True)   # (tm, 1)

        acc = acc + partial * s_ref[:, g, :] + xg_sum * z_ref[:, g, :]
    acc_ref[...] = acc

    @pl.when(k == pl.num_programs(2) - 1)
    def _():
        o_ref[...] = (acc_ref[...] + b_ref[...]).astype(o_ref.dtype)


# ----------------------------------------------------------------------------
# Wrappers (glue)
# ----------------------------------------------------------------------------
def _round_up(value, multiple):
    return ((value + multiple - 1) // multiple) * multiple


def prepare_awq_params(packed_weights, scaling_factors, adjusted_zeros, bias_term,
                       input_dim, output_dim, grp_sz):
    """One-time conversion of the module buffers into TPU-kernel operands."""
    n_groups = input_dim // grp_sz
    q = awq_unpack(np.asarray(packed_weights), output_dim, input_dim)   # (N, K) ints
    wp_tpu = repack_nibbles_for_tpu(q)                                  # (K//8, N) int32
    # keep only the real (non-padded) group rows, promoted to f32 for the epilogue
    scales = jnp.asarray(np.asarray(scaling_factors)[:n_groups], dtype=jnp.float32)
    zeros = jnp.asarray(np.asarray(adjusted_zeros)[:n_groups], dtype=jnp.float32)
    if bias_term is None:
        bias = jnp.zeros((1, output_dim), jnp.float32)
    else:
        bias = jnp.asarray(np.asarray(bias_term), jnp.float32).reshape(1, output_dim)
    return wp_tpu, scales, zeros, bias


def awq_linear_forward(x, wp_tpu, scales, zeros, bias,
                       input_dim, output_dim, grp_sz,
                       tn=256, groups_per_step=4, tm_max=256):
    # TODO(synk): the CUDA module dispatches GEMV vs GEMM for batch<8; one Pallas
    # GEMM kernel (rows padded to a multiple of 8) covers both branches here.
    lead = x.shape[:-1]
    M = int(np.prod(lead)) if lead else 1
    K = input_dim
    n_groups = K // grp_sz

    # ---- tile selection -----------------------------------------------------
    if output_dim % tn != 0:
        tn = 128 if output_dim % 128 == 0 else output_dim
    gps = 1
    for c in range(min(groups_per_step, n_groups), 0, -1):
        if n_groups % c == 0:
            gps = c
            break
    k_steps = n_groups // gps
    tm = min(tm_max, _round_up(M, 8))
    Mp = _round_up(M, tm)

    # ---- operand prep (bf16 activations, group-major resident layout) --------
    x2 = x.reshape(M, K).astype(jnp.bfloat16)
    if Mp != M:
        x2 = jnp.pad(x2, ((0, Mp - M), (0, 0)))
    x3 = jnp.transpose(x2.reshape(Mp, n_groups, grp_sz), (1, 0, 2))  # (G, Mp, grp)
    scales3 = scales.reshape(k_steps, gps, output_dim)
    zeros3 = zeros.reshape(k_steps, gps, output_dim)

    grid = (Mp // tm, output_dim // tn, k_steps)

    out = pl.pallas_call(
        functools.partial(awq_gemm_kernel, grp_sz=grp_sz, gps=gps),
        out_shape=jax.ShapeDtypeStruct((Mp, output_dim), jnp.bfloat16),
        grid_spec=pltpu.PrefetchScalarGridSpec(
            num_scalar_prefetch=0,
            grid=grid,
            in_specs=[
                # x: all groups for this M tile stay resident across the n/k sweeps
                pl.BlockSpec((n_groups, tm, grp_sz), lambda m, n, k: (0, m, 0)),
                # packed 4-bit weights: gps quant groups per reduction step
                pl.BlockSpec((gps * grp_sz // 8, tn), lambda m, n, k: (k, n)),
                pl.BlockSpec((1, gps, tn), lambda m, n, k: (k, 0, n)),   # scales
                pl.BlockSpec((1, gps, tn), lambda m, n, k: (k, 0, n)),   # adj. zeros
                pl.BlockSpec((1, tn), lambda m, n, k: (0, n)),           # bias
            ],
            out_specs=pl.BlockSpec((tm, tn), lambda m, n, k: (m, n)),
            scratch_shapes=[pltpu.VMEM((tm, tn), jnp.float32)],
        ),
        compiler_params=pltpu.CompilerParams(
            dimension_semantics=("parallel", "parallel", "arbitrary"),
            vmem_limit_bytes=64 * 1024 * 1024),
    )(x3, wp_tpu, scales3, zeros3, bias)

    return out[:M].reshape(*lead, output_dim).astype(jnp.float16)


# ----------------------------------------------------------------------------
# Main: build deterministic synthetic "module buffers", run kernel, verify
# ----------------------------------------------------------------------------
if __name__ == "__main__":
    key = jax.random.PRNGKey(0)
    k_q, k_s, k_z, k_b, k_x = jax.random.split(key, 5)

    bit_width = 4
    grp_sz = 128
    B, S = 2, 8
    input_dim, output_dim = 256, 256          # K, N
    per_pack = 32 // bit_width                # 8
    n_groups = input_dim // grp_sz            # 2
    g_pad = compute_group_width(input_dim, grp_sz) * per_pack   # padded group rows

    # Synthetic quantized parameters (what from_dense_layer would have produced)
    q_np = np.asarray(jax.random.randint(k_q, (output_dim, input_dim), 0, 16, jnp.int32))
    scale_real = np.asarray(jax.random.uniform(k_s, (n_groups, output_dim),
                                               jnp.float32, 0.005, 0.02))
    zero_int = np.asarray(jax.random.randint(k_z, (n_groups, output_dim), 0, 16, jnp.int32))

    scaling_factors = np.zeros((g_pad, output_dim), np.float16)
    scaling_factors[:n_groups] = scale_real.astype(np.float16)
    adjusted_zeros = np.zeros((g_pad, output_dim), np.float16)
    adjusted_zeros[:n_groups] = (-(scaling_factors[:n_groups].astype(np.float32)
                                   * zero_int)).astype(np.float16)
    bias_term = np.asarray(jax.random.normal(k_b, (output_dim,), jnp.float32) * 0.1,
                           dtype=np.float16)

    # Module's packed int16 buffer (AWQ CUDA layout), shape (N//4, K)
    packed_weights = quantize_and_pack_weights(q_np, row_block=4, col_block=64)
    assert np.array_equal(awq_unpack(packed_weights, output_dim, input_dim), q_np)

    # Input (..., K) float16
    x = (jax.random.normal(k_x, (B, S, input_dim), jnp.float32) * 0.5).astype(jnp.float16)

    # Kernel path
    wp_tpu, scales_j, zeros_j, bias_j = prepare_awq_params(
        packed_weights, scaling_factors, adjusted_zeros, bias_term,
        input_dim, output_dim, grp_sz)
    out = awq_linear_forward(x, wp_tpu, scales_j, zeros_j, bias_j,
                             input_dim, output_dim, grp_sz)
    out = jax.block_until_ready(out)

    # Reference (pure numpy, same f16-stored params, f32 math)
    gid = np.arange(input_dim) // grp_sz
    W = (q_np.astype(np.float32)
         * scaling_factors.astype(np.float32)[gid, :].T
         + adjusted_zeros.astype(np.float32)[gid, :].T)               # (N, K)
    x_np = np.asarray(x).astype(np.float32).reshape(-1, input_dim)
    ref = (x_np @ W.T + bias_term.astype(np.float32)).reshape(B, S, output_dim)
    ref = ref.astype(np.float16)

    assert out.shape == (B, S, output_dim) and out.dtype == jnp.float16
    assert np.allclose(np.asarray(out), ref, rtol=2e-2, atol=2e-2), "mismatch vs reference"
    print("KERNEL_OK")
</pallas_src>

<mosaic_0001>
module attributes {stable_mosaic.version = 11 : i64} {
  func.func @awq_gemm_kernel(%arg0: i32, %arg1: i32, %arg2: i32, %arg3: memref<2x16x128xbf16, #tpu.memory_space<vmem>>, %arg4: memref<32x256xi32, #tpu.memory_space<vmem>>, %arg5: memref<1x2x256xf32, #tpu.memory_space<vmem>>, %arg6: memref<1x2x256xf32, #tpu.memory_space<vmem>>, %arg7: memref<1x256xf32, #tpu.memory_space<vmem>>, %arg8: memref<16x256xbf16, #tpu.memory_space<vmem>>, %arg9: memref<16x256xf32, #tpu.memory_space<vmem>>) attributes {dimension_semantics = [#tpu.dimension_semantics<parallel>, #tpu.dimension_semantics<parallel>, #tpu.dimension_semantics<arbitrary>], iteration_bounds = array<i64: 1, 1, 1>, scalar_prefetch = 0 : i64, scratch_operands = 1 : i64, tpu.core_type = #tpu.core_type<tc>, window_params = [{transform_indices = @transform_0, window_bounds = array<i64: 2, 16, 128>}, {transform_indices = @transform_1, window_bounds = array<i64: 32, 256>}, {transform_indices = @transform_2, window_bounds = array<i64: 1, 2, 256>}, {transform_indices = @transform_3, window_bounds = array<i64: 1, 2, 256>}, {transform_indices = @transform_4, window_bounds = array<i64: 1, 256>}, {transform_indices = @transform_5, window_bounds = array<i64: 16, 256>}]} {
    %c0_i32 = arith.constant 0 : i32
    %0 = arith.cmpi eq, %arg2, %c0_i32 : i32
    %1 = arith.extui %0 : i1 to i32
    %c0_i32_0 = arith.constant 0 : i32
    %2 = arith.cmpi ne, %1, %c0_i32_0 : i32
    scf.if %2 {
      %cst_30 = arith.constant 0.000000e+00 : f32
      %69 = vector.broadcast %cst_30 : f32 to vector<16x256xf32>
      %c0_31 = arith.constant 0 : index
      %c0_32 = arith.constant 0 : index
      %70 = vector.load %arg9[%c0_31, %c0_32] : memref<16x256xf32, #tpu.memory_space<vmem>>, vector<16x256xf32>
      tpu.vector_store %arg9[%c0_31, %c0_32], %69 {strides = array<i32>} : memref<16x256xf32, #tpu.memory_space<vmem>>, vector<16x256xf32>,
    } else {
    }
    %3 = tpu.iota {dimensions = array<i32: 1>} : vector<1x8x256xi32>
    %c4_i32 = arith.constant 4 : i32
    %4 = vector.broadcast %c4_i32 : i32 to vector<1x8x256xi32>
    %5 = arith.muli %3, %4 : vector<1x8x256xi32>
    %c0 = arith.constant 0 : index
    %c0_1 = arith.constant 0 : index
    %6 = vector.load %arg9[%c0, %c0_1] : memref<16x256xf32, #tpu.memory_space<vmem>>, vector<16x256xf32>
    %c0_2 = arith.constant 0 : index
    %c0_3 = arith.constant 0 : index
    %7 = vector.load %arg4[%c0_2, %c0_3] : memref<32x256xi32, #tpu.memory_space<vmem>>, vector<16x256xi32>
    %8 = vector.shape_cast %7 : vector<16x256xi32> to vector<16x1x256xi32>
    %9 = vector.broadcast %8 : vector<16x1x256xi32> to vector<16x8x256xi32>
    %10 = vector.broadcast %5 : vector<1x8x256xi32> to vector<16x8x256xi32>
    %11 = arith.shrsi %9, %10 : vector<16x8x256xi32>
    %c15_i32 = arith.constant 15 : i32
    %12 = vector.broadcast %c15_i32 : i32 to vector<16x8x256xi32>
    %13 = arith.andi %11, %12 : vector<16x8x256xi32>
    %14 = vector.shape_cast %13 : vector<16x8x256xi32> to vector<128x256xi32>
    %15 = arith.sitofp %14 : vector<128x256xi32> to vector<128x256xbf16>
    %c2_i32 = arith.constant 2 : i32
    %16 = arith.muli %arg2, %c2_i32 : i32
    %c0_i32_4 = arith.constant 0 : i32
    %17 = arith.addi %16, %c0_i32_4 : i32
    %18 = arith.index_cast %17 : i32 to index
    %c0_5 = arith.constant 0 : index
    %c0_6 = arith.constant 0 : index
    %19 = vector.load %arg3[%18, %c0_5, %c0_6] : memref<2x16x128xbf16, #tpu.memory_space<vmem>>, vector<1x16x128xbf16>
    %20 = vector.shape_cast %19 : vector<1x16x128xbf16> to vector<16x128xbf16>
    %cst = arith.constant dense<0.000000e+00> : vector<16x256xf32>
    %21 = tpu.matmul %20, %15, %cst {dimension_numbers = #tpu.dot_dimension_numbers<[1], [0], [0], [1], [0, 0, 1, 1], [], []>} : vector<16x128xbf16>, vector<128x256xbf16>, vector<16x256xf32> -> vector<16x256xf32>
    %22 = arith.extf %20 : vector<16x128xbf16> to vector<16x128xf32>
    %cst_7 = arith.constant dense<0.000000e+00> : vector<16xf32>
    %23 = vector.multi_reduction <add>, %22, %cst_7 [1] : vector<16x128xf32> to vector<16xf32>
    %24 = vector.shape_cast %23 : vector<16xf32> to vector<16x1xf32>
    %c0_8 = arith.constant 0 : index
    %c0_9 = arith.constant 0 : index
    %c0_10 = arith.constant 0 : index
    %25 = vector.load %arg5[%c0_8, %c0_9, %c0_10] : memref<1x2x256xf32, #tpu.memory_space<vmem>>, vector<1x1x256xf32>
    %26 = vector.shape_cast %25 : vector<1x1x256xf32> to vector<1x256xf32>
    %27 = vector.broadcast %26 : vector<1x256xf32> to vector<16x256xf32>
    %28 = arith.mulf %21, %27 : vector<16x256xf32>
    %29 = arith.addf %6, %28 : vector<16x256xf32>
    %c0_11 = arith.constant 0 : index
    %c0_12 = arith.constant 0 : index
    %c0_13 = arith.constant 0 : index
    %30 = vector.load %arg6[%c0_11, %c0_12, %c0_13] : memref<1x2x256xf32, #tpu.memory_space<vmem>>, vector<1x1x256xf32>
    %31 = vector.shape_cast %30 : vector<1x1x256xf32> to vector<1x256xf32>
    %32 = vector.broadcast %24 : vector<16x1xf32> to vector<16x256xf32>
    %33 = vector.broadcast %31 : vector<1x256xf32> to vector<16x256xf32>
    %34 = arith.mulf %32, %33 : vector<16x256xf32>
    %35 = arith.addf %29, %34 : vector<16x256xf32>
    %c16 = arith.constant 16 : index
    %c0_14 = arith.constant 0 : index
    %36 = vector.load %arg4[%c16, %c0_14] : memref<32x256xi32, #tpu.memory_space<vmem>>, vector<16x256xi32>
    %37 = vector.shape_cast %36 : vector<16x256xi32> to vector<16x1x256xi32>
    %38 = vector.broadcast %37 : vector<16x1x256xi32> to vector<16x8x256xi32>
    %39 = vector.broadcast %5 : vector<1x8x256xi32> to vector<16x8x256xi32>
    %40 = arith.shrsi %38, %39 : vector<16x8x256xi32>
    %c15_i32_15 = arith.constant 15 : i32
    %41 = vector.broadcast %c15_i32_15 : i32 to vector<16x8x256xi32>
    %42 = arith.andi %40, %41 : vector<16x8x256xi32>
    %43 = vector.shape_cast %42 : vector<16x8x256xi32> to vector<128x256xi32>
    %44 = arith.sitofp %43 : vector<128x256xi32> to vector<128x256xbf16>
    %c2_i32_16 = arith.constant 2 : i32
    %45 = arith.muli %arg2, %c2_i32_16 : i32
    %c1_i32 = arith.constant 1 : i32
    %46 = arith.addi %45, %c1_i32 : i32
    %47 = arith.index_cast %46 : i32 to index
    %c0_17 = arith.constant 0 : index
    %c0_18 = arith.constant 0 : index
    %48 = vector.load %arg3[%47, %c0_17, %c0_18] : memref<2x16x128xbf16, #tpu.memory_space<vmem>>, vector<1x16x128xbf16>
    %49 = vector.shape_cast %48 : vector<1x16x128xbf16> to vector<16x128xbf16>
    %cst_19 = arith.constant dense<0.000000e+00> : vector<16x256xf32>
    %50 = tpu.matmul %49, %44, %cst_19 {dimension_numbers = #tpu.dot_dimension_numbers<[1], [0], [0], [1], [0, 0, 1, 1], [], []>} : vector<16x128xbf16>, vector<128x256xbf16>, vector<16x256xf32> -> vector<16x256xf32>
    %51 = arith.extf %49 : vector<16x128xbf16> to vector<16x128xf32>
    %cst_20 = arith.constant dense<0.000000e+00> : vector<16xf32>
    %52 = vector.multi_reduction <add>, %51, %cst_20 [1] : vector<16x128xf32> to vector<16xf32>
    %53 = vector.shape_cast %52 : vector<16xf32> to vector<16x1xf32>
    %c0_21 = arith.constant 0 : index
    %c1 = arith.constant 1 : index
    %c0_22 = arith.constant 0 : index
    %54 = vector.load %arg5[%c0_21, %c1, %c0_22] : memref<1x2x256xf32, #tpu.memory_space<vmem>>, vector<1x1x256xf32>
    %55 = vector.shape_cast %54 : vector<1x1x256xf32> to vector<1x256xf32>
    %56 = vector.broadcast %55 : vector<1x256xf32> to vector<16x256xf32>
    %57 = arith.mulf %50, %56 : vector<16x256xf32>
    %58 = arith.addf %35, %57 : vector<16x256xf32>
    %c0_23 = arith.constant 0 : index
    %c1_24 = arith.constant 1 : index
    %c0_25 = arith.constant 0 : index
    %59 = vector.load %arg6[%c0_23, %c1_24, %c0_25] : memref<1x2x256xf32, #tpu.memory_space<vmem>>, vector<1x1x256xf32>
    %60 = vector.shape_cast %59 : vector<1x1x256xf32> to vector<1x256xf32>
    %61 = vector.broadcast %53 : vector<16x1xf32> to vector<16x256xf32>
    %62 = vector.broadcast %60 : vector<1x256xf32> to vector<16x256xf32>
    %63 = arith.mulf %61, %62 : vector<16x256xf32>
    %64 = arith.addf %58, %63 : vector<16x256xf32>
    %c0_26 = arith.constant 0 : index
    %c0_27 = arith.constant 0 : index
    %65 = vector.load %arg9[%c0_26, %c0_27] : memref<16x256xf32, #tpu.memory_space<vmem>>, vector<16x256xf32>
    tpu.vector_store %arg9[%c0_26, %c0_27], %64 {strides = array<i32>} : memref<16x256xf32, #tpu.memory_space<vmem>>, vector<16x256xf32>,
    %c0_i32_28 = arith.constant 0 : i32
    %66 = arith.cmpi eq, %arg2, %c0_i32_28 : i32
    %67 = arith.extui %66 : i1 to i32
    %c0_i32_29 = arith.constant 0 : i32
    %68 = arith.cmpi ne, %67, %c0_i32_29 : i32
    scf.if %68 {
      %c0_30 = arith.constant 0 : index
      %c0_31 = arith.constant 0 : index
      %69 = vector.load %arg9[%c0_30, %c0_31] : memref<16x256xf32, #tpu.memory_space<vmem>>, vector<16x256xf32>
      %c0_32 = arith.constant 0 : index
      %c0_33 = arith.constant 0 : index
      %70 = vector.load %arg7[%c0_32, %c0_33] : memref<1x256xf32, #tpu.memory_space<vmem>>, vector<1x256xf32>
      %71 = vector.broadcast %70 : vector<1x256xf32> to vector<16x256xf32>
      %72 = arith.addf %69, %71 : vector<16x256xf32>
      %73 = arith.truncf %72 : vector<16x256xf32> to vector<16x256xbf16>
      %c0_34 = arith.constant 0 : index
      %c0_35 = arith.constant 0 : index
      %74 = vector.load %arg8[%c0_34, %c0_35] : memref<16x256xbf16, #tpu.memory_space<vmem>>, vector<16x256xbf16>
      tpu.vector_store %arg8[%c0_34, %c0_35], %73 {strides = array<i32>} : memref<16x256xbf16, #tpu.memory_space<vmem>>, vector<16x256xbf16>,
    } else {
    }
    return
  }
  func.func @transform_0(%arg0: i32, %arg1: i32, %arg2: i32) -> (i32, i32, i32) {
    %c0_i32 = arith.constant 0 : i32
    %c0_i32_0 = arith.constant 0 : i32
    %c0_i32_1 = arith.constant 0 : i32
    return %c0_i32, %arg0, %c0_i32_0 : i32, i32, i32
  }
  func.func @transform_1(%arg0: i32, %arg1: i32, %arg2: i32) -> (i32, i32) {
    %c0_i32 = arith.constant 0 : i32
    return %arg2, %arg1 : i32, i32
  }
  func.func @transform_2(%arg0: i32, %arg1: i32, %arg2: i32) -> (i32, i32, i32) {
    %c0_i32 = arith.constant 0 : i32
    %c0_i32_0 = arith.constant 0 : i32
    return %arg2, %c0_i32, %arg1 : i32, i32, i32
  }
  func.func @transform_3(%arg0: i32, %arg1: i32, %arg2: i32) -> (i32, i32, i32) {
    %c0_i32 = arith.constant 0 : i32
    %c0_i32_0 = arith.constant 0 : i32
    return %arg2, %c0_i32, %arg1 : i32, i32, i32
  }
  func.func @transform_4(%arg0: i32, %arg1: i32, %arg2: i32) -> (i32, i32) {
    %c0_i32 = arith.constant 0 : i32
    %c0_i32_0 = arith.constant 0 : i32
    return %c0_i32, %arg1 : i32, i32
  }
  func.func @transform_5(%arg0: i32, %arg1: i32, %arg2: i32) -> (i32, i32) {
    %c0_i32 = arith.constant 0 : i32
    return %arg0, %arg1 : i32, i32
  }
}

</mosaic_0001>

<llo_original>
// kernel: tpu_custom_call.1
$region0: #{tpu_custom_call.1}
  #allocation0 [shape = 'u32[]', space=smem, size = 0x4, offset = 0x4, fixed_abs, tag = 'smem constant byte address 0x4 - core index']
  #allocation1 [shape = 'u32[72,128]{1,0:T(1,128)}', space=vmem, size = 0x9000, scoped, tag = 'internal scratch']
  #allocation2 [shape = 'f32[16,256]{1,0:T(8,128)}', space=vmem, size = 0x4000, scoped, tag = 'scratch operand']
  %s0 = inlined_call_operand.hbm [shape: bf16[2,16,128], index: 0, kind: input, shape index: {}]
  %s1 = inlined_call_operand.hbm [shape: s32[32,256], index: 1, kind: input, shape index: {}]
  %s2 = inlined_call_operand.hbm [shape: f32[1,2,256], index: 2, kind: input, shape index: {}]
  %s3 = inlined_call_operand.hbm [shape: f32[1,2,256], index: 3, kind: input, shape index: {}]
  %s4 = inlined_call_operand.vmem [shape: f32[1,256], index: 4, kind: input, shape index: {}]
  %s5 = inlined_call_operand.hbm [shape: bf16[16,256], index: 5, kind: output, shape index: {}]
  %s6 = sld [smem:[#allocation0]]
  $region54: #{tpu_custom_call.1} parent=0
    _
  %s8 = ssub.s32 1, %s6
  %s9 = scalar_select 0, %s8, %s6
  $region1: #{tpu_custom_call.1} parent=0
    #allocation3 [shape = 'u8[8192]{0}', space=vmem, size = 0x2000, scoped, tag = 'input window, operand 0, single buffered']
    #allocation4 [shape = 's32[1]{0}', space=sflag, size = 0x4, scoped, tag = 'scoped memory for tpu_custom_call.1']
    #allocation5 [shape = 's32[1]{0}', space=sflag, size = 0x4, scoped, tag = 'scoped memory for tpu_custom_call.1']
    #allocation6 [shape = 'u8[32768]{0}', space=vmem, size = 0x8000, scoped, tag = 'input window, operand 1, single buffered']
    #allocation7 [shape = 's32[1]{0}', space=sflag, size = 0x4, scoped, tag = 'scoped memory for tpu_custom_call.1']
    #allocation8 [shape = 'u8[2048]{0}', space=vmem, size = 0x800, scoped, tag = 'input window, operand 2, single buffered']
    #allocation9 [shape = 'u8[2048]{0}', space=vmem, size = 0x800, scoped, tag = 'input window, operand 3, single buffered']
    #allocation10 [shape = 's32[1]{0}', space=sflag, size = 0x4, scoped, tag = 'scoped memory for tpu_custom_call.1']
    #allocation11 [shape = 'u8[8192]{0}', space=vmem, size = 0x2000, scoped, tag = 'output window, operand 0, single buffered']
    %10 = vsyncpa [#allocation4], 0
    %11 = vsyncpa [#allocation7], 0
    %12 = vsyncpa [#allocation10], 0
    %13 = vsyncpa [#allocation5], 0
    // Predicated region
    $region2: #{tpu_custom_call.1} parent=1 // pred_check
      _
    $region3: #{tpu_custom_call.1} parent=1 // pred_check_branch
      %15 = sbr.rel (0) target = $region5
    $region4: #{tpu_custom_call.1} parent=1 // pred_region
      %17 = vsyncadd [#allocation4], 0
      %s18 = sshll.u32 %s0, 4
      %s19 = int_to_ptr.hbm [resolvable:$true] %s18
      %s20 = sshll.u32 [#allocation3], 4
      %s21 = int_to_ptr.vmem [resolvable:$true] %s20
      %26 = dma.hbm_to_vmem [thread:$0]  %s19, 256, %s21, [#allocation4], 64, 64, 4
    $region5: #{tpu_custom_call.1} parent=1 // pred_fallthru
      _
    // Predicated region
    $region6: #{tpu_custom_call.1} parent=1 // pred_check
      _
    $region7: #{tpu_custom_call.1} parent=1 // pred_check_branch
      %28 = sbr.rel (0) target = $region9
    $region8: #{tpu_custom_call.1} parent=1 // pred_region
      %30 = vsyncadd [#allocation7], 0
      %s31 = sshll.u32 %s1, 4
      %s32 = int_to_ptr.hbm [resolvable:$true] %s31
      %s33 = sshll.u32 [#allocation6], 4
      %s34 = int_to_ptr.vmem [resolvable:$true] %s33
      %39 = dma.hbm_to_vmem [thread:$0]  %s32, 1024, %s34, [#allocation7], 256, 256, 16
    $region9: #{tpu_custom_call.1} parent=1 // pred_fallthru
      _
    // Predicated region
    $region10: #{tpu_custom_call.1} parent=1 // pred_check
      _
    $region11: #{tpu_custom_call.1} parent=1 // pred_check_branch
      %41 = sbr.rel (0) target = $region13
    $region12: #{tpu_custom_call.1} parent=1 // pred_region
      %43 = vsyncadd [#allocation7], 0
      %s45 = sshll.u32 %s2, 4
      %s46 = int_to_ptr.hbm [resolvable:$true] %s45
      %s47 = sshll.u32 [#allocation8], 4
      %s48 = int_to_ptr.vmem [resolvable:$true] %s47
      %50 = dma.hbm_to_vmem [thread:$0]  %s46, 64, %s48, [#allocation7]
    $region13: #{tpu_custom_call.1} parent=1 // pred_fallthru
      _
    // Predicated region
    $region14: #{tpu_custom_call.1} parent=1 // pred_check
      _
    $region15: #{tpu_custom_call.1} parent=1 // pred_check_branch
      %52 = sbr.rel (0) target = $region17
    $region16: #{tpu_custom_call.1} parent=1 // pred_region
      %54 = vsyncadd [#allocation10], 0
      %s56 = sshll.u32 %s3, 4
      %s57 = int_to_ptr.hbm [resolvable:$true] %s56
      %s58 = sshll.u32 [#allocation9], 4
      %s59 = int_to_ptr.vmem [resolvable:$true] %s58
      %61 = dma.hbm_to_vmem [thread:$0]  %s57, 64, %s59, [#allocation10]
    $region17: #{tpu_custom_call.1} parent=1 // pred_fallthru
      _
    // Predicated region
    $region18: #{tpu_custom_call.1} parent=1 // pred_check
      _
    $region19: #{tpu_custom_call.1} parent=1 // pred_check_branch
      %63 = sbr.rel (0) target = $region21
    $region20: #{tpu_custom_call.1} parent=1 // pred_region
      _
    $region21: #{tpu_custom_call.1} parent=1 // pred_fallthru
      _
    // Predicated region
    $region22: #{tpu_custom_call.1} parent=1 // pred_check
      _
    $region23: #{tpu_custom_call.1} parent=1 // pred_check_branch
      %65 = sbr.rel (0) target = $region25
    $region24: #{tpu_custom_call.1} parent=1 // pred_region
      %67 = dma.done [#allocation4], 256
    $region25: #{tpu_custom_call.1} parent=1 // pred_fallthru
      _
    // Predicated region
    $region26: #{tpu_custom_call.1} parent=1 // pred_check
      _
    $region27: #{tpu_custom_call.1} parent=1 // pred_check_branch
      %69 = sbr.rel (0) target = $region29
    $region28: #{tpu_custom_call.1} parent=1 // pred_region
      %71 = dma.done [#allocation7], 1024
    $region29: #{tpu_custom_call.1} parent=1 // pred_fallthru
      _
    // Predicated region
    $region30: #{tpu_custom_call.1} parent=1 // pred_check
      _
    $region31: #{tpu_custom_call.1} parent=1 // pred_check_branch
      %73 = sbr.rel (0) target = $region33
    $region32: #{tpu_custom_call.1} parent=1 // pred_region
      %75 = dma.done [#allocation7], 64
    $region33: #{tpu_custom_call.1} parent=1 // pred_fallthru
      _
    // Predicated region
    $region34: #{tpu_custom_call.1} parent=1 // pred_check
      _
    $region35: #{tpu_custom_call.1} parent=1 // pred_check_branch
      %77 = sbr.rel (0) target = $region37
    $region36: #{tpu_custom_call.1} parent=1 // pred_region
      %79 = dma.done [#allocation10], 64
    $region37: #{tpu_custom_call.1} parent=1 // pred_fallthru
      _
    %p80 = scmp.eq.s32.totalorder 0, 0
    // Predicated region
    $region38: #{tpu_custom_call.1} parent=1 // pred_check
      %p81 = pneg %p80
    $region39: #{tpu_custom_call.1} parent=1 // pred_check_branch
      %83 = sbr.rel (%p81) target = $region41
    $region40: #{tpu_custom_call.1} parent=1 // pred_region
      %84 = vst [vmem:[#allocation2] sm:$0xff] 0.0
      %85 = vst [vmem:[#allocation2 + $0x8] sm:$0xff] 0.0
      %86 = vst [vmem:[#allocation2 + $0x10] sm:$0xff] 0.0
      %87 = vst [vmem:[#allocation2 + $0x18] sm:$0xff] 0.0
    $region41: #{tpu_custom_call.1} parent=1 // pred_fallthru
      _
    %v88 = vlaneseq
    %v89 = vshrl.u32 %v88, 7
    %v90 = vmul.u32 %v89, 4
    %v91 = vld [vmem:[#allocation2] sm:$0xff]
    %v92 = vld [vmem:[#allocation2 + $0x8] sm:$0xff]
    %v93 = vld [vmem:[#allocation2 + $0x10] sm:$0xff]
    %v94 = vld [vmem:[#allocation2 + $0x18] sm:$0xff]
    %v95 = vld [vmem:[#allocation6] sm:$0xff]
    %v96 = vld [vmem:[#allocation6 + $0x8] sm:$0xff]
    %v97 = vld [vmem:[#allocation6 + $0x10] sm:$0xff]
    %v98 = vld [vmem:[#allocation6 + $0x18] sm:$0xff]
    %v99 = vrot.slane %v96, 7
    %v100 = vrot.slane %v98, 7
    %vm101 = vcmask 1040384
    %v102 = vsel %vm101, %v95, %v99
    %vm103 = vcmask 1041409
    %v104 = vsel %vm103, %v95, %v99
    %v105 = vrot.slane %v104, 1
    %vm106 = vcmask 1042434
    %v107 = vsel %vm106, %v95, %v99
    %v108 = vrot.slane %v107, 2
    %vm109 = vcmask 1043459
    %v110 = vsel %vm109, %v95, %v99
    %v111 = vrot.slane %v110, 3
    %vm112 = vcmask 1044484
    %v113 = vsel %vm112, %v95, %v99
    %v114 = vrot.slane %v113, 4
    %vm115 = vcmask 1045509
    %v116 = vsel %vm115, %v95, %v99
    %v117 = vrot.slane %v116, 5
    %vm118 = vcmask 1046534
    %v119 = vsel %vm118, %v95, %v99
    %v120 = vrot.slane %v119, 6
    %vm121 = vcmask 1046528
    %v122 = vsel %vm121, %v99, %v95
    %v123 = vrot.slane %v122, 7
    %v124 = vsel %vm101, %v97, %v100
    %v125 = vsel %vm103, %v97, %v100
    %v126 = vrot.slane %v125, 1
    %v127 = vsel %vm106, %v97, %v100
    %v128 = vrot.slane %v127, 2
    %v129 = vsel %vm109, %v97, %v100
    %v130 = vrot.slane %v129, 3
    %v131 = vsel %vm112, %v97, %v100
    %v132 = vrot.slane %v131, 4
    %v133 = vsel %vm115, %v97, %v100
    %v134 = vrot.slane %v133, 5
    %v135 = vsel %vm118, %v97, %v100
    %v136 = vrot.slane %v135, 6
    %v137 = vsel %vm121, %v100, %v97
    %v138 = vrot.slane %v137, 7
    %v139 = vperm.slane %v102, 0
    %v140 = vperm.slane %v102, 1
    %v141 = vperm.slane %v105, 0
    %v142 = vperm.slane %v105, 1
    %v143 = vperm.slane %v108, 0
    %v144 = vperm.slane %v108, 1
    %v145 = vperm.slane %v111, 0
    %v146 = vperm.slane %v111, 1
    %v147 = vperm.slane %v114, 0
    %v148 = vperm.slane %v114, 1
    %v149 = vperm.slane %v117, 0
    %v150 = vperm.slane %v117, 1
    %v151 = vperm.slane %v120, 0
    %v152 = vperm.slane %v120, 1
    %v153 = vperm.slane %v123, 0
    %v154 = vperm.slane %v123, 1
    %v155 = vperm.slane %v124, 0
    %v156 = vperm.slane %v124, 1
    %v157 = vperm.slane %v126, 0
    %v158 = vperm.slane %v126, 1
    %v159 = vperm.slane %v128, 0
    %v160 = vperm.slane %v128, 1
    %v161 = vperm.slane %v130, 0
    %v162 = vperm.slane %v130, 1
    %v163 = vperm.slane %v132, 0
    %v164 = vperm.slane %v132, 1
    %v165 = vperm.slane %v134, 0
    %v166 = vperm.slane %v134, 1
    %v167 = vperm.slane %v136, 0
    %v168 = vperm.slane %v136, 1
    %v169 = vperm.slane %v138, 0
    %v170 = vperm.slane %v138, 1
    %v171 = vshra.s32 %v139, %v90
    %v172 = vshra.s32 %v140, %v90
    %v173 = vshra.s32 %v141, %v90
    %v174 = vshra.s32 %v142, %v90
    %v175 = vshra.s32 %v143, %v90
    %v176 = vshra.s32 %v144, %v90
    %v177 = vshra.s32 %v145, %v90
    %v178 = vshra.s32 %v146, %v90
    %v179 = vshra.s32 %v147, %v90
    %v180 = vshra.s32 %v148, %v90
    %v181 = vshra.s32 %v149, %v90
    %v182 = vshra.s32 %v150, %v90
    %v183 = vshra.s32 %v151, %v90
    %v184 = vshra.s32 %v152, %v90
    %v185 = vshra.s32 %v153, %v90
    %v186 = vshra.s32 %v154, %v90
    %v187 = vshra.s32 %v155, %v90
    %v188 = vshra.s32 %v156, %v90
    %v189 = vshra.s32 %v157, %v90
    %v190 = vshra.s32 %v158, %v90
    %v191 = vshra.s32 %v159, %v90
    %v192 = vshra.s32 %v160, %v90
    %v193 = vshra.s32 %v161, %v90
    %v194 = vshra.s32 %v162, %v90
    %v195 = vshra.s32 %v163, %v90
    %v196 = vshra.s32 %v164, %v90
    %v197 = vshra.s32 %v165, %v90
    %v198 = vshra.s32 %v166, %v90
    %v199 = vshra.s32 %v167, %v90
    %v200 = vshra.s32 %v168, %v90
    %v201 = vshra.s32 %v169, %v90
    %v202 = vshra.s32 %v170, %v90
    %v203 = vand.u32 %v171, 15
    %v204 = vand.u32 %v172, 15
    %v205 = vand.u32 %v173, 15
    %v206 = vand.u32 %v174, 15
    %v207 = vand.u32 %v175, 15
    %v208 = vand.u32 %v176, 15
    %v209 = vand.u32 %v177, 15
    %v210 = vand.u32 %v178, 15
    %v211 = vand.u32 %v179, 15
    %v212 = vand.u32 %v180, 15
    %v213 = vand.u32 %v181, 15
    %v214 = vand.u32 %v182, 15
    %v215 = vand.u32 %v183, 15
    %v216 = vand.u32 %v184, 15
    %v217 = vand.u32 %v185, 15
    %v218 = vand.u32 %v186, 15
    %v219 = vand.u32 %v187, 15
    %v220 = vand.u32 %v188, 15
    %v221 = vand.u32 %v189, 15
    %v222 = vand.u32 %v190, 15
    %v223 = vand.u32 %v191, 15
    %v224 = vand.u32 %v192, 15
    %v225 = vand.u32 %v193, 15
    %v226 = vand.u32 %v194, 15
    %v227 = vand.u32 %v195, 15
    %v228 = vand.u32 %v196, 15
    %v229 = vand.u32 %v197, 15
    %v230 = vand.u32 %v198, 15
    %v231 = vand.u32 %v199, 15
    %v232 = vand.u32 %v200, 15
    %v233 = vand.u32 %v201, 15
    %v234 = vand.u32 %v202, 15
    %v235 = vcvt.s32.f32 %v203
    %v236 = vcvt.s32.f32 %v204
    %v237 = vcvt.s32.f32 %v205
    %v238 = vcvt.s32.f32 %v206
    %v239 = vcvt.s32.f32 %v207
    %v240 = vcvt.s32.f32 %v208
    %v241 = vcvt.s32.f32 %v209
    %v242 = vcvt.s32.f32 %v210
    %v243 = vcvt.s32.f32 %v211
    %v244 = vcvt.s32.f32 %v212
    %v245 = vcvt.s32.f32 %v213
    %v246 = vcvt.s32.f32 %v214
    %v247 = vcvt.s32.f32 %v215
    %v248 = vcvt.s32.f32 %v216
    %v249 = vcvt.s32.f32 %v217
    %v250 = vcvt.s32.f32 %v218
    %v251 = vcvt.s32.f32 %v219
    %v252 = vcvt.s32.f32 %v220
    %v253 = vcvt.s32.f32 %v221
    %v254 = vcvt.s32.f32 %v222
    %v255 = vcvt.s32.f32 %v223
    %v256 = vcvt.s32.f32 %v224
    %v257 = vcvt.s32.f32 %v225
    %v258 = vcvt.s32.f32 %v226
    %v259 = vcvt.s32.f32 %v227
    %v260 = vcvt.s32.f32 %v228
    %v261 = vcvt.s32.f32 %v229
    %v262 = vcvt.s32.f32 %v230
    %v263 = vcvt.s32.f32 %v231
    %v264 = vcvt.s32.f32 %v232
    %v265 = vcvt.s32.f32 %v233
    %v266 = vcvt.s32.f32 %v234
    %v267 = vpack.c.bf16 %v237, %v235
    %v268 = vpack.c.bf16 %v238, %v236
    %v269 = vpack.c.bf16 %v241, %v239
    %v270 = vpack.c.bf16 %v242, %v240
    %v271 = vpack.c.bf16 %v245, %v243
    %v272 = vpack.c.bf16 %v246, %v244
    %v273 = vpack.c.bf16 %v249, %v247
    %v274 = vpack.c.bf16 %v250, %v248
    %v275 = vpack.c.bf16 %v253, %v251
    %v276 = vpack.c.bf16 %v254, %v252
    %v277 = vpack.c.bf16 %v257, %v255
    %v278 = vpack.c.bf16 %v258, %v256
    %v279 = vpack.c.bf16 %v261, %v259
    %v280 = vpack.c.bf16 %v262, %v260
    %v281 = vpack.c.bf16 %v265, %v263
    %v282 = vpack.c.bf16 %v266, %v264
    %s283 = smul.u32 0, 2
    %s284 = smul.u32 %s283, 2
    %s285 = smul.addr %s284, 4
    %s286 = scalar_lea.vmem [#allocation3], %s285
    %v287 = vld [vmem:[%s286] sm:$0xf]
    %v288 = vld [vmem:[%s286 + $0x4] sm:$0xf]
    %v291 = vunpack.c.l.b16 %v287
    %v292 = vunpack.c.l.b16 %v288
    %v293 = vpack.c.b16 %v292, %v291
    %295 = vmatpush.bf16.msra.mxu0 %v281
    %296 = vmatpush.bf16.msra.mxu0 %v279
    %297 = vmatpush.bf16.msra.mxu0 %v277
    %298 = vmatpush.bf16.msra.mxu0 %v275
    %299 = vmatpush.bf16.msra.mxu0 %v273
    %300 = vmatpush.bf16.msra.mxu0 %v271
    %301 = vmatpush.bf16.msra.mxu0 %v269
    %302 = vmatpush.bf16.msra.mxu0 %v267
    %303 = vmatmul.bf16.gmra.mxu0 %v293
    %v304 = vpop.f32.mrf.mxu0
    %v305 = vadd.f32 0.0, %v304
    %v306 = vpop.f32.mrf.mxu0
    %v307 = vadd.f32 0.0, %v306
    %308 = vdwg.mxu0
    %309 = vmatpush.bf16.msra.mxu0 %v282
    %310 = vmatpush.bf16.msra.mxu0 %v280
    %311 = vmatpush.bf16.msra.mxu0 %v278
    %312 = vmatpush.bf16.msra.mxu0 %v276
    %313 = vmatpush.bf16.msra.mxu0 %v274
    %314 = vmatpush.bf16.msra.mxu0 %v272
    %315 = vmatpush.bf16.msra.mxu0 %v270
    %316 = vmatpush.bf16.msra.mxu0 %v268
    %317 = vmatmul.bf16.gmra.mxu0 %v293
    %v318 = vpop.f32.mrf.mxu0
    %v319 = vadd.f32 0.0, %v318
    %v320 = vpop.f32.mrf.mxu0
    %v321 = vadd.f32 0.0, %v320
    %322 = vdwg.mxu0
    %v323 = vunpack.c.l.bf16 %v287
    %v324 = vunpack.c.l.bf16 %v288
    %325 = vadd.xlane.f32.xlu0 %v323
    %v326 = vpop.xlane.xlu0 %325
    %327 = vadd.xlane.f32.xlu0 %v324
    %v328 = vpop.xlane.xlu0 %327
    %v329 = vld [vmem:[#allocation8] ss:$2 sm:$0x3]
    %v331 = vperm.slane %v329, 0
    %v332 = vperm.slane %v329, 1
    %v335 = vmul.f32 %v305, %v331
    %v336 = vmul.f32 %v319, %v332
    %v337 = vmul.f32 %v307, %v331
    %v338 = vmul.f32 %v321, %v332
    %v339 = vadd.f32 %v91, %v335
    %v340 = vadd.f32 %v92, %v336
    %v341 = vadd.f32 %v93, %v337
    %v342 = vadd.f32 %v94, %v338
    %v343 = vld [vmem:[#allocation9] ss:$2 sm:$0x3]
    %v345 = vperm.slane %v343, 0
    %v346 = vperm.slane %v343, 1
    %v349 = vmul.f32 %v326, %v345
    %v350 = vmul.f32 %v326, %v346
    %v351 = vmul.f32 %v328, %v345
    %v352 = vmul.f32 %v328, %v346
    %v353 = vadd.f32 %v339, %v349
    %v354 = vadd.f32 %v340, %v350
    %v355 = vadd.f32 %v341, %v351
    %v356 = vadd.f32 %v342, %v352
    %v357 = vld [vmem:[#allocation6 + $0x20] sm:$0xff]
    %v358 = vld [vmem:[#allocation6 + $0x28] sm:$0xff]
    %v359 = vld [vmem:[#allocation6 + $0x30] sm:$0xff]
    %v360 = vld [vmem:[#allocation6 + $0x38] sm:$0xff]
    %v361 = vrot.slane %v358, 7
    %v362 = vrot.slane %v360, 7
    %v363 = vsel %vm101, %v357, %v361
    %v364 = vsel %vm103, %v357, %v361
    %v365 = vrot.slane %v364, 1
    %v366 = vsel %vm106, %v357, %v361
    %v367 = vrot.slane %v366, 2
    %v368 = vsel %vm109, %v357, %v361
    %v369 = vrot.slane %v368, 3
    %v370 = vsel %vm112, %v357, %v361
    %v371 = vrot.slane %v370, 4
    %v372 = vsel %vm115, %v357, %v361
    %v373 = vrot.slane %v372, 5
    %v374 = vsel %vm118, %v357, %v361
    %v375 = vrot.slane %v374, 6
    %v376 = vsel %vm121, %v361, %v357
    %v377 = vrot.slane %v376, 7
    %v378 = vsel %vm101, %v359, %v362
    %v379 = vsel %vm103, %v359, %v362
    %v380 = vrot.slane %v379, 1
    %v381 = vsel %vm106, %v359, %v362
    %v382 = vrot.slane %v381, 2
    %v383 = vsel %vm109, %v359, %v362
    %v384 = vrot.slane %v383, 3
    %v385 = vsel %vm112, %v359, %v362
    %v386 = vrot.slane %v385, 4
    %v387 = vsel %vm115, %v359, %v362
    %v388 = vrot.slane %v387, 5
    %v389 = vsel %vm118, %v359, %v362
    %v390 = vrot.slane %v389, 6
    %v391 = vsel %vm121, %v362, %v359
    %v392 = vrot.slane %v391, 7
    %v393 = vperm.slane %v363, 0
    %v394 = vperm.slane %v363, 1
    %v395 = vperm.slane %v365, 0
    %v396 = vperm.slane %v365, 1
    %v397 = vperm.slane %v367, 0
    %v398 = vperm.slane %v367, 1
    %v399 = vperm.slane %v369, 0
    %v400 = vperm.slane %v369, 1
    %v401 = vperm.slane %v371, 0
    %v402 = vperm.slane %v371, 1
    %v403 = vperm.slane %v373, 0
    %v404 = vperm.slane %v373, 1
    %v405 = vperm.slane %v375, 0
    %v406 = vperm.slane %v375, 1
    %v407 = vperm.slane %v377, 0
    %v408 = vperm.slane %v377, 1
    %v409 = vperm.slane %v378, 0
    %v410 = vperm.slane %v378, 1
    %v411 = vperm.slane %v380, 0
    %v412 = vperm.slane %v380, 1
    %v413 = vperm.slane %v382, 0
    %v414 = vperm.slane %v382, 1
    %v415 = vperm.slane %v384, 0
    %v416 = vperm.slane %v384, 1
    %v417 = vperm.slane %v386, 0
    %v418 = vperm.slane %v386, 1
    %v419 = vperm.slane %v388, 0
    %v420 = vperm.slane %v388, 1
    %v421 = vperm.slane %v390, 0
    %v422 = vperm.slane %v390, 1
    %v423 = vperm.slane %v392, 0
    %v424 = vperm.slane %v392, 1
    %v425 = vshra.s32 %v393, %v90
    %v426 = vshra.s32 %v394, %v90
    %v427 = vshra.s32 %v395, %v90
    %v428 = vshra.s32 %v396, %v90
    %v429 = vshra.s32 %v397, %v90
    %v430 = vshra.s32 %v398, %v90
    %v431 = vshra.s32 %v399, %v90
    %v432 = vshra.s32 %v400, %v90
    %v433 = vshra.s32 %v401, %v90
    %v434 = vshra.s32 %v402, %v90
    %v435 = vshra.s32 %v403, %v90
    %v436 = vshra.s32 %v404, %v90
    %v437 = vshra.s32 %v405, %v90
    %v438 = vshra.s32 %v406, %v90
    %v439 = vshra.s32 %v407, %v90
    %v440 = vshra.s32 %v408, %v90
    %v441 = vshra.s32 %v409, %v90
    %v442 = vshra.s32 %v410, %v90
    %v443 = vshra.s32 %v411, %v90
    %v444 = vshra.s32 %v412, %v90
    %v445 = vshra.s32 %v413, %v90
    %v446 = vshra.s32 %v414, %v90
    %v447 = vshra.s32 %v415, %v90
    %v448 = vshra.s32 %v416, %v90
    %v449 = vshra.s32 %v417, %v90
    %v450 = vshra.s32 %v418, %v90
    %v451 = vshra.s32 %v419, %v90
    %v452 = vshra.s32 %v420, %v90
    %v453 = vshra.s32 %v421, %v90
    %v454 = vshra.s32 %v422, %v90
    %v455 = vshra.s32 %v423, %v90
    %v456 = vshra.s32 %v424, %v90
    %v457 = vand.u32 %v425, 15
    %v458 = vand.u32 %v426, 15
    %v459 = vand.u32 %v427, 15
    %v460 = vand.u32 %v428, 15
    %v461 = vand.u32 %v429, 15
    %v462 = vand.u32 %v430, 15
    %v463 = vand.u32 %v431, 15
    %v464 = vand.u32 %v432, 15
    %v465 = vand.u32 %v433, 15
    %v466 = vand.u32 %v434, 15
    %v467 = vand.u32 %v435, 15
    %v468 = vand.u32 %v436, 15
    %v469 = vand.u32 %v437, 15
    %v470 = vand.u32 %v438, 15
    %v471 = vand.u32 %v439, 15
    %v472 = vand.u32 %v440, 15
    %v473 = vand.u32 %v441, 15
    %v474 = vand.u32 %v442, 15
    %v475 = vand.u32 %v443, 15
    %v476 = vand.u32 %v444, 15
    %v477 = vand.u32 %v445, 15
    %v478 = vand.u32 %v446, 15
    %v479 = vand.u32 %v447, 15
    %v480 = vand.u32 %v448, 15
    %v481 = vand.u32 %v449, 15
    %v482 = vand.u32 %v450, 15
    %v483 = vand.u32 %v451, 15
    %v484 = vand.u32 %v452, 15
    %v485 = vand.u32 %v453, 15
    %v486 = vand.u32 %v454, 15
    %v487 = vand.u32 %v455, 15
    %v488 = vand.u32 %v456, 15
    %v489 = vcvt.s32.f32 %v457
    %v490 = vcvt.s32.f32 %v458
    %v491 = vcvt.s32.f32 %v459
    %v492 = vcvt.s32.f32 %v460
    %v493 = vcvt.s32.f32 %v461
    %v494 = vcvt.s32.f32 %v462
    %v495 = vcvt.s32.f32 %v463
    %v496 = vcvt.s32.f32 %v464
    %v497 = vcvt.s32.f32 %v465
    %v498 = vcvt.s32.f32 %v466
    %v499 = vcvt.s32.f32 %v467
    %v500 = vcvt.s32.f32 %v468
    %v501 = vcvt.s32.f32 %v469
    %v502 = vcvt.s32.f32 %v470
    %v503 = vcvt.s32.f32 %v471
    %v504 = vcvt.s32.f32 %v472
    %v505 = vcvt.s32.f32 %v473
    %v506 = vcvt.s32.f32 %v474
    %v507 = vcvt.s32.f32 %v475
    %v508 = vcvt.s32.f32 %v476
    %v509 = vcvt.s32.f32 %v477
    %v510 = vcvt.s32.f32 %v478
    %v511 = vcvt.s32.f32 %v479
    %v512 = vcvt.s32.f32 %v480
    %v513 = vcvt.s32.f32 %v481
    %v514 = vcvt.s32.f32 %v482
    %v515 = vcvt.s32.f32 %v483
    %v516 = vcvt.s32.f32 %v484
    %v517 = vcvt.s32.f32 %v485
    %v518 = vcvt.s32.f32 %v486
    %v519 = vcvt.s32.f32 %v487
    %v520 = vcvt.s32.f32 %v488
    %v521 = vpack.c.bf16 %v491, %v489
    %v522 = vpack.c.bf16 %v492, %v490
    %v523 = vpack.c.bf16 %v495, %v493
    %v524 = vpack.c.bf16 %v496, %v494
    %v525 = vpack.c.bf16 %v499, %v497
    %v526 = vpack.c.bf16 %v500, %v498
    %v527 = vpack.c.bf16 %v503, %v501
    %v528 = vpack.c.bf16 %v504, %v502
    %v529 = vpack.c.bf16 %v507, %v505
    %v530 = vpack.c.bf16 %v508, %v506
    %v531 = vpack.c.bf16 %v511, %v509
    %v532 = vpack.c.bf16 %v512, %v510
    %v533 = vpack.c.bf16 %v515, %v513
    %v534 = vpack.c.bf16 %v516, %v514
    %v535 = vpack.c.bf16 %v519, %v517
    %v536 = vpack.c.bf16 %v520, %v518
    %s537 = sadd.s32 %s283, 1
    %s538 = smul.u32 %s537, 2
    %s539 = smul.addr %s538, 4
    %s540 = scalar_lea.vmem [#allocation3], %s539
    %v541 = vld [vmem:[%s540] sm:$0xf]
    %v542 = vld [vmem:[%s540 + $0x4] sm:$0xf]
    %v545 = vunpack.c.l.b16 %v541
    %v546 = vunpack.c.l.b16 %v542
    %v547 = vpack.c.b16 %v546, %v545
    %549 = vmatpush.bf16.msra.mxu0 %v535
    %550 = vmatpush.bf16.msra.mxu0 %v533
    %551 = vmatpush.bf16.msra.mxu0 %v531
    %552 = vmatpush.bf16.msra.mxu0 %v529
    %553 = vmatpush.bf16.msra.mxu0 %v527
    %554 = vmatpush.bf16.msra.mxu0 %v525
    %555 = vmatpush.bf16.msra.mxu0 %v523
    %556 = vmatpush.bf16.msra.mxu0 %v521
    %557 = vmatmul.bf16.gmra.mxu0 %v547
    %v558 = vpop.f32.mrf.mxu0
    %v559 = vadd.f32 0.0, %v558
    %v560 = vpop.f32.mrf.mxu0
    %v561 = vadd.f32 0.0, %v560
    %562 = vdwg.mxu0
    %563 = vmatpush.bf16.msra.mxu0 %v536
    %564 = vmatpush.bf16.msra.mxu0 %v534
    %565 = vmatpush.bf16.msra.mxu0 %v532
    %566 = vmatpush.bf16.msra.mxu0 %v530
    %567 = vmatpush.bf16.msra.mxu0 %v528
    %568 = vmatpush.bf16.msra.mxu0 %v526
    %569 = vmatpush.bf16.msra.mxu0 %v524
    %570 = vmatpush.bf16.msra.mxu0 %v522
    %571 = vmatmul.bf16.gmra.mxu0 %v547
    %v572 = vpop.f32.mrf.mxu0
    %v573 = vadd.f32 0.0, %v572
    %v574 = vpop.f32.mrf.mxu0
    %v575 = vadd.f32 0.0, %v574
    %576 = vdwg.mxu0
    %v577 = vunpack.c.l.bf16 %v541
    %v578 = vunpack.c.l.bf16 %v542
    %579 = vadd.xlane.f32.xlu0 %v577
    %v580 = vpop.xlane.xlu0 %579
    %581 = vadd.xlane.f32.xlu0 %v578
    %v582 = vpop.xlane.xlu0 %581
    %s583 = scalar_lea.vmem [#allocation8], 1
    %v584 = vld [vmem:[%s583] ss:$2 sm:$0x3]
    %v586 = vperm.slane %v584, 0
    %v587 = vperm.slane %v584, 1
    %v590 = vmul.f32 %v559, %v586
    %v591 = vmul.f32 %v573, %v587
    %v592 = vmul.f32 %v561, %v586
    %v593 = vmul.f32 %v575, %v587
    %v594 = vadd.f32 %v353, %v590
    %v595 = vadd.f32 %v354, %v591
    %v596 = vadd.f32 %v355, %v592
    %v597 = vadd.f32 %v356, %v593
    %s598 = scalar_lea.vmem [#allocation9], 1
    %v599 = vld [vmem:[%s598] ss:$2 sm:$0x3]
    %v601 = vperm.slane %v599, 0
    %v602 = vperm.slane %v599, 1
    %v605 = vmul.f32 %v580, %v601
    %v606 = vmul.f32 %v580, %v602
    %v607 = vmul.f32 %v582, %v601
    %v608 = vmul.f32 %v582, %v602
    %v609 = vadd.f32 %v594, %v605
    %v610 = vadd.f32 %v595, %v606
    %v611 = vadd.f32 %v596, %v607
    %v612 = vadd.f32 %v597, %v608
    %613 = vst [vmem:[#allocation2] sm:$0xff] %v609
    %614 = vst [vmem:[#allocation2 + $0x8] sm:$0xff] %v610
    %615 = vst [vmem:[#allocation2 + $0x10] sm:$0xff] %v611
    %616 = vst [vmem:[#allocation2 + $0x18] sm:$0xff] %v612
    // Predicated region
    $region42: #{tpu_custom_call.1} parent=1 // pred_check
      %p617 = pneg %p80
    $region43: #{tpu_custom_call.1} parent=1 // pred_check_branch
      %619 = sbr.rel (%p617) target = $region45
    $region44: #{tpu_custom_call.1} parent=1 // pred_region
      %v620 = vld [vmem:[#allocation2] sm:$0xff]
      %v621 = vld [vmem:[#allocation2 + $0x8] sm:$0xff]
      %v622 = vld [vmem:[#allocation2 + $0x10] sm:$0xff]
      %v623 = vld [vmem:[#allocation2 + $0x18] sm:$0xff]
      %v624 = vld [vmem:[%s4] sm:$0x3]
      %v626 = vperm.slane %v624, 0
      %v627 = vperm.slane %v624, 1
      %v630 = vadd.f32 %v620, %v626
      %v631 = vadd.f32 %v621, %v627
      %v632 = vadd.f32 %v622, %v626
      %v633 = vadd.f32 %v623, %v627
      %v634 = vpack.c.bf16 %v631, %v630
      %v635 = vpack.c.bf16 %v633, %v632
      %636 = vst [vmem:[#allocation11] sm:$0xff] %v634
      %637 = vst [vmem:[#allocation11 + $0x8] sm:$0xff] %v635
    $region45: #{tpu_custom_call.1} parent=1 // pred_fallthru
      _
    // Predicated region
    $region46: #{tpu_custom_call.1} parent=1 // pred_check
      _
    $region47: #{tpu_custom_call.1} parent=1 // pred_check_branch
      %639 = sbr.rel (0) target = $region49
    $region48: #{tpu_custom_call.1} parent=1 // pred_region
      %641 = vsyncadd [#allocation5], 0
      %s642 = sshll.u32 [#allocation11], 4
      %s643 = int_to_ptr.vmem [resolvable:$true] %s642
      %s644 = sshll.u32 %s5, 4
      %s645 = int_to_ptr.hbm [resolvable:$true] %s644
      %650 = dma.vmem_to_hbm [thread:$0]  %s643, 256, %s645, [#allocation5], 128, 128, 8
    $region49: #{tpu_custom_call.1} parent=1 // pred_fallthru
      _
    // Predicated region
    $region50: #{tpu_custom_call.1} parent=1 // pred_check
      _
    $region51: #{tpu_custom_call.1} parent=1 // pred_check_branch
      %652 = sbr.rel (0) target = $region53
    $region52: #{tpu_custom_call.1} parent=1 // pred_region
      %654 = dma.done [#allocation5], 256
    $region53: #{tpu_custom_call.1} parent=1 // pred_fallthru
      _
    %655 = vsyncpa [#allocation4], 1
    %656 = vsyncpa [#allocation7], 1
    %657 = vsyncpa [#allocation10], 1
    %658 = vsyncpa [#allocation5], 1

</llo_original>
